<compile_context>
chip_gen: v7x
topology: tpu7x:2x2x1
jax: 0.10.0
libtpu: 0.0.40
codegen_flags: <defaults>
</compile_context>

<pallas_src>
import functools

import jax
import jax.numpy as jnp
from jax import lax
from jax.experimental import pallas as pl
from jax.experimental.pallas import tpu as pltpu


def lstm_fc_kernel(T, B, x_ref, wih_ref, whh_ref, b_ref, wfc_ref, bfc_ref,
                   y_ref):
    """Whole LSTM + fc2 forward in one invocation (no grid).

    x_ref   : (B*T, D)  batch-major rows (row = b*T + t), free reshape of (B,T,D)
    wih_ref : (D, 4H)   W_ih^T, g-gate columns pre-scaled by 2
    whh_ref : (H, 4H)   W_hh^T, g-gate columns pre-scaled by 2
    b_ref   : (1, 4H)   b_ih + b_hh, g-gate slice pre-scaled by 2
    wfc_ref : (H, O)    W_fc^T
    bfc_ref : (1, O)
    y_ref   : (B*T, O)  batch-major rows; written with a single store
    """
    H = whh_ref.shape[0]

    # Loop-invariant operands: load once.
    wih = wih_ref[...]
    whh = whh_ref[...]
    bias = b_ref[...]
    wfc = wfc_ref[...]
    bfc = bfc_ref[...]

    # ---- Phase 1 (off the serial path): one fused input projection ----------
    # (B*T, D) @ (D, 4H) + bias : replaces T per-step matmuls and T broadcasts.
    gx = jnp.dot(x_ref[...], wih, preferred_element_type=jnp.float32) + bias

    # ---- Phase 2: sequential recurrence; h/c stay in vregs -------------------
    # t is a Python int, so every slice below is a static (compile-time)
    # sublane select and the gx extraction is independent of the carry.
    # Full unroll is fine at T=8 / H=32 (see scaling note in the header).
    h = jnp.zeros((B, H), jnp.float32)
    c = jnp.zeros((B, H), jnp.float32)
    h_steps = []
    for t in range(T):
        # Rows {b*T + t} of the precomputed input projection (batch-major).
        gx_t = jnp.concatenate(
            [gx[b * T + t:b * T + t + 1, :] for b in range(B)], axis=0)  # (B,4H)
        gates = gx_t + jnp.dot(h, whh, preferred_element_type=jnp.float32)
        # Single full-width EUP push: i,f,o = sigmoid slices; g-gate columns
        # were pre-scaled by 2 so tanh(x) = 2*sigmoid(2x) - 1 (exact identity).
        s = jax.nn.sigmoid(gates)
        i_g = s[:, 0 * H:1 * H]
        f_g = s[:, 1 * H:2 * H]
        g_g = 2.0 * s[:, 2 * H:3 * H] - 1.0
        o_g = s[:, 3 * H:4 * H]
        c = f_g * c + i_g * g_g
        h = o_g * jnp.tanh(c)
        h_steps.append(h)

    # Reassemble hidden states in batch-major row order (b*T + t) so the fused
    # fc matmul directly yields the output slab in its final layout.
    hs = jnp.concatenate(
        [jnp.concatenate([h_steps[t][b:b + 1, :] for t in range(T)], axis=0)
         for b in range(B)], axis=0)                                   # (B*T, H)

    # ---- Phase 3 (off the serial path): one fused fc matmul + single store --
    y = jnp.dot(hs, wfc, preferred_element_type=jnp.float32) + bfc     # (B*T, O)
    y_ref[...] = y.astype(y_ref.dtype)


def prepare_params(w_ih, w_hh, b_ih, b_hh, w_fc, b_fc):
    """One-time parameter prep (keep off the per-call hot path).

    Pre-transposes weights for right-multiplication, combines the two LSTM
    biases, and pre-scales the g-gate columns by 2 so the kernel can recover
    tanh from a single full-width sigmoid (tanh(x) = 2*sigmoid(2x) - 1).
    """
    H = w_hh.shape[1]
    gate_scale = jnp.concatenate(
        [jnp.ones((2 * H,), jnp.float32),
         jnp.full((H,), 2.0, jnp.float32),
         jnp.ones((H,), jnp.float32)])                       # [i, f, g, o] order
    wih_t = (w_ih.T * gate_scale[None, :]).astype(jnp.float32)   # (D, 4H)
    whh_t = (w_hh.T * gate_scale[None, :]).astype(jnp.float32)   # (H, 4H)
    bias = ((b_ih + b_hh) * gate_scale).reshape(1, 4 * H).astype(jnp.float32)
    wfc_t = jnp.asarray(w_fc.T, jnp.float32)                     # (H, O)
    bfc = b_fc.reshape(1, -1).astype(jnp.float32)                # (1, O)
    return wih_t, whh_t, bias, wfc_t, bfc


@jax.jit
def rnn_forward(obs, params):
    """obs: (B, T, D) float32; params from prepare_params. Returns (B, T, O)."""
    wih_t, whh_t, bias, wfc_t, bfc = params
    B, T, D = obs.shape
    O = wfc_t.shape[1]

    x2d = obs.reshape(B * T, D)          # free, contiguous (batch-major rows)

    # Whole problem (~20 KiB resident) trivially fits VMEM — single invocation,
    # no grid.  Reintroduce a T-tiled grid / vmem_limit_bytes when scaling.
    y2d = pl.pallas_call(
        functools.partial(lstm_fc_kernel, T, B),
        out_shape=jax.ShapeDtypeStruct((B * T, O), jnp.float32),
        in_specs=[pl.BlockSpec(memory_space=pltpu.MemorySpace.VMEM)
                  for _ in range(6)],
        out_specs=pl.BlockSpec(memory_space=pltpu.MemorySpace.VMEM),
    )(x2d, wih_t, whh_t, bias, wfc_t, bfc)

    return y2d.reshape(B, T, O)          # free, contiguous


def rnn_reference(obs, w_ih, w_hh, b_ih, b_hh, w_fc, b_fc):
    """Pure-JAX reference (PyTorch nn.LSTM + Linear semantics)."""
    B, T, D = obs.shape
    H = w_hh.shape[1]

    def step(carry, x_t):
        h, c = carry
        gates = x_t @ w_ih.T + b_ih + h @ w_hh.T + b_hh
        i = jax.nn.sigmoid(gates[:, 0 * H:1 * H])
        f = jax.nn.sigmoid(gates[:, 1 * H:2 * H])
        g = jnp.tanh(gates[:, 2 * H:3 * H])
        o = jax.nn.sigmoid(gates[:, 3 * H:4 * H])
        c = f * c + i * g
        h = o * jnp.tanh(c)
        return (h, c), h

    h0 = jnp.zeros((B, H), jnp.float32)
    c0 = jnp.zeros((B, H), jnp.float32)
    _, hs = jax.lax.scan(step, (h0, c0), jnp.transpose(obs, (1, 0, 2)))
    hs = jnp.transpose(hs, (1, 0, 2))                 # (B, T, H)
    out = hs.reshape(B * T, H) @ w_fc.T + b_fc
    return out.reshape(B, T, -1)


if __name__ == "__main__":
    B, T = 2, 8
    input_dim, latent_dim, output_dim = 8, 32, 4

    key = jax.random.PRNGKey(0)
    ks = jax.random.split(key, 8)
    bound = 1.0 / jnp.sqrt(latent_dim)

    # Deterministic parameter init (uniform, like PyTorch's default LSTM init).
    w_ih = jax.random.uniform(ks[0], (4 * latent_dim, input_dim), jnp.float32, -bound, bound)
    w_hh = jax.random.uniform(ks[1], (4 * latent_dim, latent_dim), jnp.float32, -bound, bound)
    b_ih = jax.random.uniform(ks[2], (4 * latent_dim,), jnp.float32, -bound, bound)
    b_hh = jax.random.uniform(ks[3], (4 * latent_dim,), jnp.float32, -bound, bound)
    w_fc = jax.random.uniform(ks[4], (output_dim, latent_dim), jnp.float32, -bound, bound)
    b_fc = jax.random.uniform(ks[5], (output_dim,), jnp.float32, -bound, bound)

    obs = jax.random.normal(ks[6], (B, T, input_dim), jnp.float32)

    params = prepare_params(w_ih, w_hh, b_ih, b_hh, w_fc, b_fc)   # one-time prep
    out = rnn_forward(obs, params)
    out = jax.block_until_ready(out)

    ref = rnn_reference(obs, w_ih, w_hh, b_ih, b_hh, w_fc, b_fc)
    assert out.shape == (B, T, output_dim), out.shape
    # tanh(x) = 2*sigmoid(2x) - 1 is mathematically exact; the slightly looser
    # atol only covers ~1e-6 f32 rounding drift accumulated over T steps.
    assert jnp.allclose(out, ref, atol=2e-5, rtol=1e-5), \
        float(jnp.max(jnp.abs(out - ref)))

    print("KERNEL_OK")
</pallas_src>

<mosaic_0001>
module attributes {stable_mosaic.version = 11 : i64} {
  func.func @lstm_fc_kernel(%arg0: memref<16x8xf32, #tpu.memory_space<vmem>>, %arg1: memref<8x128xf32, #tpu.memory_space<vmem>>, %arg2: memref<32x128xf32, #tpu.memory_space<vmem>>, %arg3: memref<1x128xf32, #tpu.memory_space<vmem>>, %arg4: memref<32x4xf32, #tpu.memory_space<vmem>>, %arg5: memref<1x4xf32, #tpu.memory_space<vmem>>, %arg6: memref<16x4xf32, #tpu.memory_space<vmem>>) attributes {dimension_semantics = [], scalar_prefetch = 0 : i64, scratch_operands = 0 : i64, tpu.core_type = #tpu.core_type<tc>} {
    %c0 = arith.constant 0 : index
    %c0_0 = arith.constant 0 : index
    %0 = vector.load %arg1[%c0, %c0_0] : memref<8x128xf32, #tpu.memory_space<vmem>>, vector<8x128xf32>
    %c0_1 = arith.constant 0 : index
    %c0_2 = arith.constant 0 : index
    %1 = vector.load %arg2[%c0_1, %c0_2] : memref<32x128xf32, #tpu.memory_space<vmem>>, vector<32x128xf32>
    %c0_3 = arith.constant 0 : index
    %c0_4 = arith.constant 0 : index
    %2 = vector.load %arg3[%c0_3, %c0_4] : memref<1x128xf32, #tpu.memory_space<vmem>>, vector<1x128xf32>
    %c0_5 = arith.constant 0 : index
    %c0_6 = arith.constant 0 : index
    %3 = vector.load %arg4[%c0_5, %c0_6] : memref<32x4xf32, #tpu.memory_space<vmem>>, vector<32x4xf32>
    %c0_7 = arith.constant 0 : index
    %c0_8 = arith.constant 0 : index
    %4 = vector.load %arg5[%c0_7, %c0_8] : memref<1x4xf32, #tpu.memory_space<vmem>>, vector<1x4xf32>
    %c0_9 = arith.constant 0 : index
    %c0_10 = arith.constant 0 : index
    %5 = vector.load %arg0[%c0_9, %c0_10] : memref<16x8xf32, #tpu.memory_space<vmem>>, vector<16x8xf32>
    %cst = arith.constant dense<0.000000e+00> : vector<16x128xf32>
    %6 = tpu.matmul %5, %0, %cst {dimension_numbers = #tpu.dot_dimension_numbers<[1], [0], [0], [1], [0, 0, 1, 1], [], []>} : vector<16x8xf32>, vector<8x128xf32>, vector<16x128xf32> -> vector<16x128xf32>
    %7 = vector.broadcast %2 : vector<1x128xf32> to vector<16x128xf32>
    %8 = arith.addf %6, %7 : vector<16x128xf32>
    %cst_11 = arith.constant 0.000000e+00 : f32
    %9 = vector.broadcast %cst_11 : f32 to vector<2x32xf32>
    %cst_12 = arith.constant 0.000000e+00 : f32
    %10 = vector.broadcast %cst_12 : f32 to vector<2x32xf32>
    %11 = vector.extract_strided_slice %8 {offsets = [0, 0], sizes = [1, 128], strides = [1, 1]} : vector<16x128xf32> to vector<1x128xf32>
    %12 = vector.extract_strided_slice %8 {offsets = [8, 0], sizes = [1, 128], strides = [1, 1]} : vector<16x128xf32> to vector<1x128xf32>
    %13 = tpu.concatenate %11, %12 in 0 : vector<1x128xf32>, vector<1x128xf32> -> vector<2x128xf32>
    %cst_13 = arith.constant dense<0.000000e+00> : vector<2x128xf32>
    %14 = tpu.matmul %9, %1, %cst_13 {dimension_numbers = #tpu.dot_dimension_numbers<[1], [0], [0], [1], [0, 0, 1, 1], [], []>} : vector<2x32xf32>, vector<32x128xf32>, vector<2x128xf32> -> vector<2x128xf32>
    %15 = arith.addf %13, %14 : vector<2x128xf32>
    %16 = arith.negf %15 : vector<2x128xf32>
    %17 = math.exp %16 : vector<2x128xf32>
    %cst_14 = arith.constant 1.000000e+00 : f32
    %18 = vector.broadcast %cst_14 : f32 to vector<2x128xf32>
    %19 = arith.addf %18, %17 : vector<2x128xf32>
    %20 = arith.divf %18, %19 : vector<2x128xf32>
    %21 = vector.extract_strided_slice %20 {offsets = [0, 0], sizes = [2, 32], strides = [1, 1]} : vector<2x128xf32> to vector<2x32xf32>
    %22 = vector.extract_strided_slice %20 {offsets = [0, 32], sizes = [2, 32], strides = [1, 1]} : vector<2x128xf32> to vector<2x32xf32>
    %23 = vector.extract_strided_slice %20 {offsets = [0, 64], sizes = [2, 32], strides = [1, 1]} : vector<2x128xf32> to vector<2x32xf32>
    %cst_15 = arith.constant 2.000000e+00 : f32
    %24 = vector.broadcast %cst_15 : f32 to vector<2x32xf32>
    %25 = arith.mulf %24, %23 : vector<2x32xf32>
    %cst_16 = arith.constant 1.000000e+00 : f32
    %26 = vector.broadcast %cst_16 : f32 to vector<2x32xf32>
    %27 = arith.subf %25, %26 : vector<2x32xf32>
    %28 = vector.extract_strided_slice %20 {offsets = [0, 96], sizes = [2, 32], strides = [1, 1]} : vector<2x128xf32> to vector<2x32xf32>
    %29 = arith.mulf %22, %10 : vector<2x32xf32>
    %30 = arith.mulf %21, %27 : vector<2x32xf32>
    %31 = arith.addf %29, %30 : vector<2x32xf32>
    %32 = math.tanh %31 : vector<2x32xf32>
    %33 = arith.mulf %28, %32 : vector<2x32xf32>
    %34 = vector.extract_strided_slice %8 {offsets = [1, 0], sizes = [1, 128], strides = [1, 1]} : vector<16x128xf32> to vector<1x128xf32>
    %35 = vector.extract_strided_slice %8 {offsets = [9, 0], sizes = [1, 128], strides = [1, 1]} : vector<16x128xf32> to vector<1x128xf32>
    %36 = tpu.concatenate %34, %35 in 0 : vector<1x128xf32>, vector<1x128xf32> -> vector<2x128xf32>
    %cst_17 = arith.constant dense<0.000000e+00> : vector<2x128xf32>
    %37 = tpu.matmul %33, %1, %cst_17 {dimension_numbers = #tpu.dot_dimension_numbers<[1], [0], [0], [1], [0, 0, 1, 1], [], []>} : vector<2x32xf32>, vector<32x128xf32>, vector<2x128xf32> -> vector<2x128xf32>
    %38 = arith.addf %36, %37 : vector<2x128xf32>
    %39 = arith.negf %38 : vector<2x128xf32>
    %40 = math.exp %39 : vector<2x128xf32>
    %cst_18 = arith.constant 1.000000e+00 : f32
    %41 = vector.broadcast %cst_18 : f32 to vector<2x128xf32>
    %42 = arith.addf %41, %40 : vector<2x128xf32>
    %43 = arith.divf %41, %42 : vector<2x128xf32>
    %44 = vector.extract_strided_slice %43 {offsets = [0, 0], sizes = [2, 32], strides = [1, 1]} : vector<2x128xf32> to vector<2x32xf32>
    %45 = vector.extract_strided_slice %43 {offsets = [0, 32], sizes = [2, 32], strides = [1, 1]} : vector<2x128xf32> to vector<2x32xf32>
    %46 = vector.extract_strided_slice %43 {offsets = [0, 64], sizes = [2, 32], strides = [1, 1]} : vector<2x128xf32> to vector<2x32xf32>
    %cst_19 = arith.constant 2.000000e+00 : f32
    %47 = vector.broadcast %cst_19 : f32 to vector<2x32xf32>
    %48 = arith.mulf %47, %46 : vector<2x32xf32>
    %cst_20 = arith.constant 1.000000e+00 : f32
    %49 = vector.broadcast %cst_20 : f32 to vector<2x32xf32>
    %50 = arith.subf %48, %49 : vector<2x32xf32>
    %51 = vector.extract_strided_slice %43 {offsets = [0, 96], sizes = [2, 32], strides = [1, 1]} : vector<2x128xf32> to vector<2x32xf32>
    %52 = arith.mulf %45, %31 : vector<2x32xf32>
    %53 = arith.mulf %44, %50 : vector<2x32xf32>
    %54 = arith.addf %52, %53 : vector<2x32xf32>
    %55 = math.tanh %54 : vector<2x32xf32>
    %56 = arith.mulf %51, %55 : vector<2x32xf32>
    %57 = vector.extract_strided_slice %8 {offsets = [2, 0], sizes = [1, 128], strides = [1, 1]} : vector<16x128xf32> to vector<1x128xf32>
    %58 = vector.extract_strided_slice %8 {offsets = [10, 0], sizes = [1, 128], strides = [1, 1]} : vector<16x128xf32> to vector<1x128xf32>
    %59 = tpu.concatenate %57, %58 in 0 : vector<1x128xf32>, vector<1x128xf32> -> vector<2x128xf32>
    %cst_21 = arith.constant dense<0.000000e+00> : vector<2x128xf32>
    %60 = tpu.matmul %56, %1, %cst_21 {dimension_numbers = #tpu.dot_dimension_numbers<[1], [0], [0], [1], [0, 0, 1, 1], [], []>} : vector<2x32xf32>, vector<32x128xf32>, vector<2x128xf32> -> vector<2x128xf32>
    %61 = arith.addf %59, %60 : vector<2x128xf32>
    %62 = arith.negf %61 : vector<2x128xf32>
    %63 = math.exp %62 : vector<2x128xf32>
    %cst_22 = arith.constant 1.000000e+00 : f32
    %64 = vector.broadcast %cst_22 : f32 to vector<2x128xf32>
    %65 = arith.addf %64, %63 : vector<2x128xf32>
    %66 = arith.divf %64, %65 : vector<2x128xf32>
    %67 = vector.extract_strided_slice %66 {offsets = [0, 0], sizes = [2, 32], strides = [1, 1]} : vector<2x128xf32> to vector<2x32xf32>
    %68 = vector.extract_strided_slice %66 {offsets = [0, 32], sizes = [2, 32], strides = [1, 1]} : vector<2x128xf32> to vector<2x32xf32>
    %69 = vector.extract_strided_slice %66 {offsets = [0, 64], sizes = [2, 32], strides = [1, 1]} : vector<2x128xf32> to vector<2x32xf32>
    %cst_23 = arith.constant 2.000000e+00 : f32
    %70 = vector.broadcast %cst_23 : f32 to vector<2x32xf32>
    %71 = arith.mulf %70, %69 : vector<2x32xf32>
    %cst_24 = arith.constant 1.000000e+00 : f32
    %72 = vector.broadcast %cst_24 : f32 to vector<2x32xf32>
    %73 = arith.subf %71, %72 : vector<2x32xf32>
    %74 = vector.extract_strided_slice %66 {offsets = [0, 96], sizes = [2, 32], strides = [1, 1]} : vector<2x128xf32> to vector<2x32xf32>
    %75 = arith.mulf %68, %54 : vector<2x32xf32>
    %76 = arith.mulf %67, %73 : vector<2x32xf32>
    %77 = arith.addf %75, %76 : vector<2x32xf32>
    %78 = math.tanh %77 : vector<2x32xf32>
    %79 = arith.mulf %74, %78 : vector<2x32xf32>
    %80 = vector.extract_strided_slice %8 {offsets = [3, 0], sizes = [1, 128], strides = [1, 1]} : vector<16x128xf32> to vector<1x128xf32>
    %81 = vector.extract_strided_slice %8 {offsets = [11, 0], sizes = [1, 128], strides = [1, 1]} : vector<16x128xf32> to vector<1x128xf32>
    %82 = tpu.concatenate %80, %81 in 0 : vector<1x128xf32>, vector<1x128xf32> -> vector<2x128xf32>
    %cst_25 = arith.constant dense<0.000000e+00> : vector<2x128xf32>
    %83 = tpu.matmul %79, %1, %cst_25 {dimension_numbers = #tpu.dot_dimension_numbers<[1], [0], [0], [1], [0, 0, 1, 1], [], []>} : vector<2x32xf32>, vector<32x128xf32>, vector<2x128xf32> -> vector<2x128xf32>
    %84 = arith.addf %82, %83 : vector<2x128xf32>
    %85 = arith.negf %84 : vector<2x128xf32>
    %86 = math.exp %85 : vector<2x128xf32>
    %cst_26 = arith.constant 1.000000e+00 : f32
    %87 = vector.broadcast %cst_26 : f32 to vector<2x128xf32>
    %88 = arith.addf %87, %86 : vector<2x128xf32>
    %89 = arith.divf %87, %88 : vector<2x128xf32>
    %90 = vector.extract_strided_slice %89 {offsets = [0, 0], sizes = [2, 32], strides = [1, 1]} : vector<2x128xf32> to vector<2x32xf32>
    %91 = vector.extract_strided_slice %89 {offsets = [0, 32], sizes = [2, 32], strides = [1, 1]} : vector<2x128xf32> to vector<2x32xf32>
    %92 = vector.extract_strided_slice %89 {offsets = [0, 64], sizes = [2, 32], strides = [1, 1]} : vector<2x128xf32> to vector<2x32xf32>
    %cst_27 = arith.constant 2.000000e+00 : f32
    %93 = vector.broadcast %cst_27 : f32 to vector<2x32xf32>
    %94 = arith.mulf %93, %92 : vector<2x32xf32>
    %cst_28 = arith.constant 1.000000e+00 : f32
    %95 = vector.broadcast %cst_28 : f32 to vector<2x32xf32>
    %96 = arith.subf %94, %95 : vector<2x32xf32>
    %97 = vector.extract_strided_slice %89 {offsets = [0, 96], sizes = [2, 32], strides = [1, 1]} : vector<2x128xf32> to vector<2x32xf32>
    %98 = arith.mulf %91, %77 : vector<2x32xf32>
    %99 = arith.mulf %90, %96 : vector<2x32xf32>
    %100 = arith.addf %98, %99 : vector<2x32xf32>
    %101 = math.tanh %100 : vector<2x32xf32>
    %102 = arith.mulf %97, %101 : vector<2x32xf32>
    %103 = vector.extract_strided_slice %8 {offsets = [4, 0], sizes = [1, 128], strides = [1, 1]} : vector<16x128xf32> to vector<1x128xf32>
    %104 = vector.extract_strided_slice %8 {offsets = [12, 0], sizes = [1, 128], strides = [1, 1]} : vector<16x128xf32> to vector<1x128xf32>
    %105 = tpu.concatenate %103, %104 in 0 : vector<1x128xf32>, vector<1x128xf32> -> vector<2x128xf32>
    %cst_29 = arith.constant dense<0.000000e+00> : vector<2x128xf32>
    %106 = tpu.matmul %102, %1, %cst_29 {dimension_numbers = #tpu.dot_dimension_numbers<[1], [0], [0], [1], [0, 0, 1, 1], [], []>} : vector<2x32xf32>, vector<32x128xf32>, vector<2x128xf32> -> vector<2x128xf32>
    %107 = arith.addf %105, %106 : vector<2x128xf32>
    %108 = arith.negf %107 : vector<2x128xf32>
    %109 = math.exp %108 : vector<2x128xf32>
    %cst_30 = arith.constant 1.000000e+00 : f32
    %110 = vector.broadcast %cst_30 : f32 to vector<2x128xf32>
    %111 = arith.addf %110, %109 : vector<2x128xf32>
    %112 = arith.divf %110, %111 : vector<2x128xf32>
    %113 = vector.extract_strided_slice %112 {offsets = [0, 0], sizes = [2, 32], strides = [1, 1]} : vector<2x128xf32> to vector<2x32xf32>
    %114 = vector.extract_strided_slice %112 {offsets = [0, 32], sizes = [2, 32], strides = [1, 1]} : vector<2x128xf32> to vector<2x32xf32>
    %115 = vector.extract_strided_slice %112 {offsets = [0, 64], sizes = [2, 32], strides = [1, 1]} : vector<2x128xf32> to vector<2x32xf32>
    %cst_31 = arith.constant 2.000000e+00 : f32
    %116 = vector.broadcast %cst_31 : f32 to vector<2x32xf32>
    %117 = arith.mulf %116, %115 : vector<2x32xf32>
    %cst_32 = arith.constant 1.000000e+00 : f32
    %118 = vector.broadcast %cst_32 : f32 to vector<2x32xf32>
    %119 = arith.subf %117, %118 : vector<2x32xf32>
    %120 = vector.extract_strided_slice %112 {offsets = [0, 96], sizes = [2, 32], strides = [1, 1]} : vector<2x128xf32> to vector<2x32xf32>
    %121 = arith.mulf %114, %100 : vector<2x32xf32>
    %122 = arith.mulf %113, %119 : vector<2x32xf32>
    %123 = arith.addf %121, %122 : vector<2x32xf32>
    %124 = math.tanh %123 : vector<2x32xf32>
    %125 = arith.mulf %120, %124 : vector<2x32xf32>
    %126 = vector.extract_strided_slice %8 {offsets = [5, 0], sizes = [1, 128], strides = [1, 1]} : vector<16x128xf32> to vector<1x128xf32>
    %127 = vector.extract_strided_slice %8 {offsets = [13, 0], sizes = [1, 128], strides = [1, 1]} : vector<16x128xf32> to vector<1x128xf32>
    %128 = tpu.concatenate %126, %127 in 0 : vector<1x128xf32>, vector<1x128xf32> -> vector<2x128xf32>
    %cst_33 = arith.constant dense<0.000000e+00> : vector<2x128xf32>
    %129 = tpu.matmul %125, %1, %cst_33 {dimension_numbers = #tpu.dot_dimension_numbers<[1], [0], [0], [1], [0, 0, 1, 1], [], []>} : vector<2x32xf32>, vector<32x128xf32>, vector<2x128xf32> -> vector<2x128xf32>
    %130 = arith.addf %128, %129 : vector<2x128xf32>
    %131 = arith.negf %130 : vector<2x128xf32>
    %132 = math.exp %131 : vector<2x128xf32>
    %cst_34 = arith.constant 1.000000e+00 : f32
    %133 = vector.broadcast %cst_34 : f32 to vector<2x128xf32>
    %134 = arith.addf %133, %132 : vector<2x128xf32>
    %135 = arith.divf %133, %134 : vector<2x128xf32>
    %136 = vector.extract_strided_slice %135 {offsets = [0, 0], sizes = [2, 32], strides = [1, 1]} : vector<2x128xf32> to vector<2x32xf32>
    %137 = vector.extract_strided_slice %135 {offsets = [0, 32], sizes = [2, 32], strides = [1, 1]} : vector<2x128xf32> to vector<2x32xf32>
    %138 = vector.extract_strided_slice %135 {offsets = [0, 64], sizes = [2, 32], strides = [1, 1]} : vector<2x128xf32> to vector<2x32xf32>
    %cst_35 = arith.constant 2.000000e+00 : f32
    %139 = vector.broadcast %cst_35 : f32 to vector<2x32xf32>
    %140 = arith.mulf %139, %138 : vector<2x32xf32>
    %cst_36 = arith.constant 1.000000e+00 : f32
    %141 = vector.broadcast %cst_36 : f32 to vector<2x32xf32>
    %142 = arith.subf %140, %141 : vector<2x32xf32>
    %143 = vector.extract_strided_slice %135 {offsets = [0, 96], sizes = [2, 32], strides = [1, 1]} : vector<2x128xf32> to vector<2x32xf32>
    %144 = arith.mulf %137, %123 : vector<2x32xf32>
    %145 = arith.mulf %136, %142 : vector<2x32xf32>
    %146 = arith.addf %144, %145 : vector<2x32xf32>
    %147 = math.tanh %146 : vector<2x32xf32>
    %148 = arith.mulf %143, %147 : vector<2x32xf32>
    %149 = vector.extract_strided_slice %8 {offsets = [6, 0], sizes = [1, 128], strides = [1, 1]} : vector<16x128xf32> to vector<1x128xf32>
    %150 = vector.extract_strided_slice %8 {offsets = [14, 0], sizes = [1, 128], strides = [1, 1]} : vector<16x128xf32> to vector<1x128xf32>
    %151 = tpu.concatenate %149, %150 in 0 : vector<1x128xf32>, vector<1x128xf32> -> vector<2x128xf32>
    %cst_37 = arith.constant dense<0.000000e+00> : vector<2x128xf32>
    %152 = tpu.matmul %148, %1, %cst_37 {dimension_numbers = #tpu.dot_dimension_numbers<[1], [0], [0], [1], [0, 0, 1, 1], [], []>} : vector<2x32xf32>, vector<32x128xf32>, vector<2x128xf32> -> vector<2x128xf32>
    %153 = arith.addf %151, %152 : vector<2x128xf32>
    %154 = arith.negf %153 : vector<2x128xf32>
    %155 = math.exp %154 : vector<2x128xf32>
    %cst_38 = arith.constant 1.000000e+00 : f32
    %156 = vector.broadcast %cst_38 : f32 to vector<2x128xf32>
    %157 = arith.addf %156, %155 : vector<2x128xf32>
    %158 = arith.divf %156, %157 : vector<2x128xf32>
    %159 = vector.extract_strided_slice %158 {offsets = [0, 0], sizes = [2, 32], strides = [1, 1]} : vector<2x128xf32> to vector<2x32xf32>
    %160 = vector.extract_strided_slice %158 {offsets = [0, 32], sizes = [2, 32], strides = [1, 1]} : vector<2x128xf32> to vector<2x32xf32>
    %161 = vector.extract_strided_slice %158 {offsets = [0, 64], sizes = [2, 32], strides = [1, 1]} : vector<2x128xf32> to vector<2x32xf32>
    %cst_39 = arith.constant 2.000000e+00 : f32
    %162 = vector.broadcast %cst_39 : f32 to vector<2x32xf32>
    %163 = arith.mulf %162, %161 : vector<2x32xf32>
    %cst_40 = arith.constant 1.000000e+00 : f32
    %164 = vector.broadcast %cst_40 : f32 to vector<2x32xf32>
    %165 = arith.subf %163, %164 : vector<2x32xf32>
    %166 = vector.extract_strided_slice %158 {offsets = [0, 96], sizes = [2, 32], strides = [1, 1]} : vector<2x128xf32> to vector<2x32xf32>
    %167 = arith.mulf %160, %146 : vector<2x32xf32>
    %168 = arith.mulf %159, %165 : vector<2x32xf32>
    %169 = arith.addf %167, %168 : vector<2x32xf32>
    %170 = math.tanh %169 : vector<2x32xf32>
    %171 = arith.mulf %166, %170 : vector<2x32xf32>
    %172 = vector.extract_strided_slice %8 {offsets = [7, 0], sizes = [1, 128], strides = [1, 1]} : vector<16x128xf32> to vector<1x128xf32>
    %173 = vector.extract_strided_slice %8 {offsets = [15, 0], sizes = [1, 128], strides = [1, 1]} : vector<16x128xf32> to vector<1x128xf32>
    %174 = tpu.concatenate %172, %173 in 0 : vector<1x128xf32>, vector<1x128xf32> -> vector<2x128xf32>
    %cst_41 = arith.constant dense<0.000000e+00> : vector<2x128xf32>
    %175 = tpu.matmul %171, %1, %cst_41 {dimension_numbers = #tpu.dot_dimension_numbers<[1], [0], [0], [1], [0, 0, 1, 1], [], []>} : vector<2x32xf32>, vector<32x128xf32>, vector<2x128xf32> -> vector<2x128xf32>
    %176 = arith.addf %174, %175 : vector<2x128xf32>
    %177 = arith.negf %176 : vector<2x128xf32>
    %178 = math.exp %177 : vector<2x128xf32>
    %cst_42 = arith.constant 1.000000e+00 : f32
    %179 = vector.broadcast %cst_42 : f32 to vector<2x128xf32>
    %180 = arith.addf %179, %178 : vector<2x128xf32>
    %181 = arith.divf %179, %180 : vector<2x128xf32>
    %182 = vector.extract_strided_slice %181 {offsets = [0, 0], sizes = [2, 32], strides = [1, 1]} : vector<2x128xf32> to vector<2x32xf32>
    %183 = vector.extract_strided_slice %181 {offsets = [0, 32], sizes = [2, 32], strides = [1, 1]} : vector<2x128xf32> to vector<2x32xf32>
    %184 = vector.extract_strided_slice %181 {offsets = [0, 64], sizes = [2, 32], strides = [1, 1]} : vector<2x128xf32> to vector<2x32xf32>
    %cst_43 = arith.constant 2.000000e+00 : f32
    %185 = vector.broadcast %cst_43 : f32 to vector<2x32xf32>
    %186 = arith.mulf %185, %184 : vector<2x32xf32>
    %cst_44 = arith.constant 1.000000e+00 : f32
    %187 = vector.broadcast %cst_44 : f32 to vector<2x32xf32>
    %188 = arith.subf %186, %187 : vector<2x32xf32>
    %189 = vector.extract_strided_slice %181 {offsets = [0, 96], sizes = [2, 32], strides = [1, 1]} : vector<2x128xf32> to vector<2x32xf32>
    %190 = arith.mulf %183, %169 : vector<2x32xf32>
    %191 = arith.mulf %182, %188 : vector<2x32xf32>
    %192 = arith.addf %190, %191 : vector<2x32xf32>
    %193 = math.tanh %192 : vector<2x32xf32>
    %194 = arith.mulf %189, %193 : vector<2x32xf32>
    %195 = vector.extract_strided_slice %33 {offsets = [0, 0], sizes = [1, 32], strides = [1, 1]} : vector<2x32xf32> to vector<1x32xf32>
    %196 = vector.extract_strided_slice %56 {offsets = [0, 0], sizes = [1, 32], strides = [1, 1]} : vector<2x32xf32> to vector<1x32xf32>
    %197 = vector.extract_strided_slice %79 {offsets = [0, 0], sizes = [1, 32], strides = [1, 1]} : vector<2x32xf32> to vector<1x32xf32>
    %198 = vector.extract_strided_slice %102 {offsets = [0, 0], sizes = [1, 32], strides = [1, 1]} : vector<2x32xf32> to vector<1x32xf32>
    %199 = vector.extract_strided_slice %125 {offsets = [0, 0], sizes = [1, 32], strides = [1, 1]} : vector<2x32xf32> to vector<1x32xf32>
    %200 = vector.extract_strided_slice %148 {offsets = [0, 0], sizes = [1, 32], strides = [1, 1]} : vector<2x32xf32> to vector<1x32xf32>
    %201 = vector.extract_strided_slice %171 {offsets = [0, 0], sizes = [1, 32], strides = [1, 1]} : vector<2x32xf32> to vector<1x32xf32>
    %202 = vector.extract_strided_slice %194 {offsets = [0, 0], sizes = [1, 32], strides = [1, 1]} : vector<2x32xf32> to vector<1x32xf32>
    %203 = tpu.concatenate %195, %196, %197, %198, %199, %200, %201, %202 in 0 : vector<1x32xf32>, vector<1x32xf32>, vector<1x32xf32>, vector<1x32xf32>, vector<1x32xf32>, vector<1x32xf32>, vector<1x32xf32>, vector<1x32xf32> -> vector<8x32xf32>
    %204 = vector.extract_strided_slice %33 {offsets = [1, 0], sizes = [1, 32], strides = [1, 1]} : vector<2x32xf32> to vector<1x32xf32>
    %205 = vector.extract_strided_slice %56 {offsets = [1, 0], sizes = [1, 32], strides = [1, 1]} : vector<2x32xf32> to vector<1x32xf32>
    %206 = vector.extract_strided_slice %79 {offsets = [1, 0], sizes = [1, 32], strides = [1, 1]} : vector<2x32xf32> to vector<1x32xf32>
    %207 = vector.extract_strided_slice %102 {offsets = [1, 0], sizes = [1, 32], strides = [1, 1]} : vector<2x32xf32> to vector<1x32xf32>
    %208 = vector.extract_strided_slice %125 {offsets = [1, 0], sizes = [1, 32], strides = [1, 1]} : vector<2x32xf32> to vector<1x32xf32>
    %209 = vector.extract_strided_slice %148 {offsets = [1, 0], sizes = [1, 32], strides = [1, 1]} : vector<2x32xf32> to vector<1x32xf32>
    %210 = vector.extract_strided_slice %171 {offsets = [1, 0], sizes = [1, 32], strides = [1, 1]} : vector<2x32xf32> to vector<1x32xf32>
    %211 = vector.extract_strided_slice %194 {offsets = [1, 0], sizes = [1, 32], strides = [1, 1]} : vector<2x32xf32> to vector<1x32xf32>
    %212 = tpu.concatenate %204, %205, %206, %207, %208, %209, %210, %211 in 0 : vector<1x32xf32>, vector<1x32xf32>, vector<1x32xf32>, vector<1x32xf32>, vector<1x32xf32>, vector<1x32xf32>, vector<1x32xf32>, vector<1x32xf32> -> vector<8x32xf32>
    %213 = tpu.concatenate %203, %212 in 0 : vector<8x32xf32>, vector<8x32xf32> -> vector<16x32xf32>
    %cst_45 = arith.constant dense<0.000000e+00> : vector<16x4xf32>
    %214 = tpu.matmul %213, %3, %cst_45 {dimension_numbers = #tpu.dot_dimension_numbers<[1], [0], [0], [1], [0, 0, 1, 1], [], []>} : vector<16x32xf32>, vector<32x4xf32>, vector<16x4xf32> -> vector<16x4xf32>
    %215 = vector.broadcast %4 : vector<1x4xf32> to vector<16x4xf32>
    %216 = arith.addf %214, %215 : vector<16x4xf32>
    %c0_46 = arith.constant 0 : index
    %c0_47 = arith.constant 0 : index
    %217 = vector.load %arg6[%c0_46, %c0_47] : memref<16x4xf32, #tpu.memory_space<vmem>>, vector<16x4xf32>
    tpu.vector_store %arg6[%c0_46, %c0_47], %216 {strides = array<i32>} : memref<16x4xf32, #tpu.memory_space<vmem>>, vector<16x4xf32>,
    return
  }
}

</mosaic_0001>

<llo_original>
// kernel: rnn_forward.1
$region0: #{rnn_forward.1}
  #allocation0 [shape = 'u32[]', space=smem, size = 0x4, offset = 0x4, fixed_abs, tag = 'smem constant byte address 0x4 - core index']
  #allocation1 [shape = 'u32[144,128]{1,0:T(1,128)}', space=vmem, size = 0x12000, scoped, tag = 'internal scratch']
  %s0 = inlined_call_operand.hbm [shape: f32[16,8], index: 0, kind: input, shape index: {}]
  %s1 = inlined_call_operand.vmem [shape: f32[8,128], index: 1, kind: input, shape index: {}]
  %s2 = inlined_call_operand.vmem [shape: f32[32,128], index: 2, kind: input, shape index: {}]
  %s3 = inlined_call_operand.vmem [shape: f32[1,128], index: 3, kind: input, shape index: {}]
  %s4 = inlined_call_operand.vmem [shape: f32[32,4], index: 4, kind: input, shape index: {}]
  %s5 = inlined_call_operand.vmem [shape: f32[1,4], index: 5, kind: input, shape index: {}]
  %s6 = inlined_call_operand.vmem [shape: f32[16,4], index: 6, kind: output, shape index: {}]
  %s7 = sld [smem:[#allocation0]]
  $region38: #{rnn_forward.1} parent=0
    _
  %s9 = ssub.s32 1, %s7
  %s10 = scalar_select 0, %s9, %s7
  $region1: #{rnn_forward.1} parent=0
    #allocation2 [shape = 'u8[8192]{0}', space=vmem, size = 0x2000, scoped, tag = 'input window, operand 0, single buffered']
    #allocation3 [shape = 's32[1]{0}', space=sflag, size = 0x4, scoped, tag = 'scoped memory for rnn_forward.1']
    %11 = vsyncpa [#allocation3], 0
    // Predicated region
    $region2: #{rnn_forward.1} parent=1 // pred_check
      _
    $region3: #{rnn_forward.1} parent=1 // pred_check_branch
      %13 = sbr.rel (0) target = $region5
    $region4: #{rnn_forward.1} parent=1 // pred_region
      %s15 = ssub.s32 256, 256
      %16 = vsyncadd [#allocation3], %s15
      %s17 = sshll.u32 [#allocation2], 4
      %s18 = int_to_ptr.vmem [resolvable:$true] %s17
      %23 = dma.hbm_to_vmem [thread:$0]  %s0, 256, %s18, [#allocation3], 128, 128, 8
    $region5: #{rnn_forward.1} parent=1 // pred_fallthru
      _
    // Predicated region
    $region6: #{rnn_forward.1} parent=1 // pred_check
      _
    $region7: #{rnn_forward.1} parent=1 // pred_check_branch
      %25 = sbr.rel (0) target = $region9
    $region8: #{rnn_forward.1} parent=1 // pred_region
      _
    $region9: #{rnn_forward.1} parent=1 // pred_fallthru
      _
    // Predicated region
    $region10: #{rnn_forward.1} parent=1 // pred_check
      _
    $region11: #{rnn_forward.1} parent=1 // pred_check_branch
      %27 = sbr.rel (0) target = $region13
    $region12: #{rnn_forward.1} parent=1 // pred_region
      _
    $region13: #{rnn_forward.1} parent=1 // pred_fallthru
      _
    // Predicated region
    $region14: #{rnn_forward.1} parent=1 // pred_check
      _
    $region15: #{rnn_forward.1} parent=1 // pred_check_branch
      %29 = sbr.rel (0) target = $region17
    $region16: #{rnn_forward.1} parent=1 // pred_region
      _
    $region17: #{rnn_forward.1} parent=1 // pred_fallthru
      _
    // Predicated region
    $region18: #{rnn_forward.1} parent=1 // pred_check
      _
    $region19: #{rnn_forward.1} parent=1 // pred_check_branch
      %31 = sbr.rel (0) target = $region21
    $region20: #{rnn_forward.1} parent=1 // pred_region
      _
    $region21: #{rnn_forward.1} parent=1 // pred_fallthru
      _
    // Predicated region
    $region22: #{rnn_forward.1} parent=1 // pred_check
      _
    $region23: #{rnn_forward.1} parent=1 // pred_check_branch
      %33 = sbr.rel (0) target = $region25
    $region24: #{rnn_forward.1} parent=1 // pred_region
      _
    $region25: #{rnn_forward.1} parent=1 // pred_fallthru
      _
    // Predicated region
    $region26: #{rnn_forward.1} parent=1 // pred_check
      _
    $region27: #{rnn_forward.1} parent=1 // pred_check_branch
      %35 = sbr.rel (0) target = $region29
    $region28: #{rnn_forward.1} parent=1 // pred_region
      %36 = dma.done [#allocation3], 256
    $region29: #{rnn_forward.1} parent=1 // pred_fallthru
      _
    %v37 = vld [vmem:[%s1] sm:$0xff]
    %v38 = vld [vmem:[%s2] sm:$0xff]
    %v39 = vld [vmem:[%s2 + $0x8] sm:$0xff]
    %v40 = vld [vmem:[%s2 + $0x10] sm:$0xff]
    %v41 = vld [vmem:[%s2 + $0x18] sm:$0xff]
    %v42 = vld [vmem:[%s3] sm:$0x1]
    %v43 = vld [vmem:[%s4] sm:$0xff]
    %v44 = vld [vmem:[%s4 + $0x8] sm:$0xff]
    %v45 = vld [vmem:[%s4 + $0x10] sm:$0xff]
    %v46 = vld [vmem:[%s4 + $0x18] sm:$0xff]
    %v47 = vld [vmem:[%s5] sm:$0x1]
    %v48 = vld [vmem:[#allocation2] sm:$0xff]
    %v49 = vld [vmem:[#allocation2 + $0x8] sm:$0xff]
    %v51 = vlaneseq
    %v52 = vshrl.u32 %v51, 7
    %v53 = vsub.s32 0, %v52
    %v54 = vrot.slane %v42, %v53
    %vm56 = vcmask 64512
    %v58 = vsel %vm56, %v48, 0
    %v61 = vsel %vm56, %v49, 0
    %63 = vmatprep.subr.mxu0 0.0
    %64 = vmatpush1.msra.mxu0 %v37
    %65 = vmatprep.subr.mxu0 0.0
    %66 = vmatpush1.msra.mxu0 0.0
    %67 = vmatprep.subr.mxu0 0.0
    %68 = vmatpush1.msra.mxu0 0.0
    %69 = vmatprep.subr.mxu0 0.0
    %70 = vmatpush1.msra.mxu0 0.0
    %71 = vmatprep.subr.mxu0 0.0
    %72 = vmatpush1.msra.mxu0 0.0
    %73 = vmatprep.subr.mxu0 0.0
    %74 = vmatpush1.msra.mxu0 0.0
    %75 = vmatprep.subr.mxu0 0.0
    %76 = vmatpush1.msra.mxu0 0.0
    %77 = vmatprep.subr.mxu0 0.0
    %78 = vmatpush1.msra.mxu0 0.0
    %79 = vmatprep.subr.mxu0 0.0
    %80 = vmatpush1.msra.mxu0 0.0
    %81 = vmatprep.subr.mxu0 0.0
    %82 = vmatpush1.msra.mxu0 0.0
    %83 = vmatprep.subr.mxu0 0.0
    %84 = vmatpush1.msra.mxu0 0.0
    %85 = vmatprep.subr.mxu0 0.0
    %86 = vmatpush1.msra.mxu0 0.0
    %87 = vmatprep.subr.mxu0 0.0
    %88 = vmatpush1.msra.mxu0 0.0
    %89 = vmatprep.subr.mxu0 0.0
    %90 = vmatpush1.msra.mxu0 0.0
    %91 = vmatprep.subr.mxu0 0.0
    %92 = vmatpush1.msra.mxu0 0.0
    %93 = vmatprep.subr.mxu0 0.0
    %94 = vmatpush1.msra.mxu0 0.0
    %95 = vmatprep.subr.mxu0 0.0
    %96 = vmatpush1.msra.mxu0 0.0
    %97 = vmatprep.subr.mxu0 0.0
    %98 = vmatpush1.msra.mxu0 0.0
    %99 = vmatprep.subr.mxu0 0.0
    %100 = vmatpush1.msra.mxu0 0.0
    %101 = vmatprep.subr.mxu0 0.0
    %102 = vmatpush1.msra.mxu0 0.0
    %103 = vmatprep.subr.mxu0 0.0
    %104 = vmatpush1.msra.mxu0 0.0
    %105 = vmatprep.subr.mxu0 0.0
    %106 = vmatpush1.msra.mxu0 0.0
    %107 = vmatprep.subr.mxu0 0.0
    %108 = vmatpush1.msra.mxu0 0.0
    %109 = vmatprep.subr.mxu0 0.0
    %110 = vmatpush1.msra.mxu0 0.0
    %111 = vmatprep.subr.mxu0 0.0
    %112 = vmatpush1.msra.mxu0 0.0
    %113 = vmatprep.subr.mxu0 0.0
    %114 = vmatpush1.msra.mxu0 0.0
    %115 = vmatprep.subr.mxu0 0.0
    %116 = vmatpush1.msra.mxu0 0.0
    %117 = vmatprep.subr.mxu0 0.0
    %118 = vmatpush1.msra.mxu0 0.0
    %119 = vmatprep.subr.mxu0 0.0
    %120 = vmatpush1.msra.mxu0 0.0
    %121 = vmatprep.subr.mxu0 0.0
    %122 = vmatpush1.msra.mxu0 0.0
    %123 = vmatprep.subr.mxu0 0.0
    %124 = vmatpush1.msra.mxu0 0.0
    %125 = vmatprep.subr.mxu0 0.0
    %126 = vmatpush1.msra.mxu0 0.0
    %127 = vmatprep.mubr.f32.mxu0 0.0
    %128 = vmatmul.mubr.f32.gmra.mrb[0].mxu0 %v58
    %v129 = vpop.f32.mrb[0].mxu0
    %v130 = vadd.f32 %v54, %v129
    %v131 = vpop.f32.mrb[0].mxu0
    %132 = vmatprep.mubr.f32.mxu0 0.0
    %133 = vmatmul.mubr.f32.gmra.mrb[0].mxu0 %v61
    %v134 = vpop.f32.mrb[0].mxu0
    %v135 = vadd.f32 %v54, %v134
    %v136 = vpop.f32.mrb[0].mxu0
    %137 = vdwg.mxu0
    %v139 = vrot.slane %v135, 7
    %vm141 = vcmask 1040384
    %v142 = vsel %vm141, %v130, %v139
    %vm143 = vcmask 261120
    %v145 = vsel %vm143, 0.0, 0
    %147 = vmatprep.subr.mxu0 0.0
    %148 = vmatpush1.msra.mxu0 %v38
    %149 = vmatprep.subr.mxu0 0.0
    %150 = vmatpush1.msra.mxu0 %v39
    %151 = vmatprep.subr.mxu0 0.0
    %152 = vmatpush1.msra.mxu0 %v40
    %153 = vmatprep.subr.mxu0 0.0
    %154 = vmatpush1.msra.mxu0 %v41
    %155 = vmatprep.subr.mxu0 0.0
    %156 = vmatpush1.msra.mxu0 0.0
    %157 = vmatprep.subr.mxu0 0.0
    %158 = vmatpush1.msra.mxu0 0.0
    %159 = vmatprep.subr.mxu0 0.0
    %160 = vmatpush1.msra.mxu0 0.0
    %161 = vmatprep.subr.mxu0 0.0
    %162 = vmatpush1.msra.mxu0 0.0
    %163 = vmatprep.subr.mxu0 0.0
    %164 = vmatpush1.msra.mxu0 0.0
    %165 = vmatprep.subr.mxu0 0.0
    %166 = vmatpush1.msra.mxu0 0.0
    %167 = vmatprep.subr.mxu0 0.0
    %168 = vmatpush1.msra.mxu0 0.0
    %169 = vmatprep.subr.mxu0 0.0
    %170 = vmatpush1.msra.mxu0 0.0
    %171 = vmatprep.subr.mxu0 0.0
    %172 = vmatpush1.msra.mxu0 0.0
    %173 = vmatprep.subr.mxu0 0.0
    %174 = vmatpush1.msra.mxu0 0.0
    %175 = vmatprep.subr.mxu0 0.0
    %176 = vmatpush1.msra.mxu0 0.0
    %177 = vmatprep.subr.mxu0 0.0
    %178 = vmatpush1.msra.mxu0 0.0
    %179 = vmatprep.subr.mxu0 0.0
    %180 = vmatpush1.msra.mxu0 0.0
    %181 = vmatprep.subr.mxu0 0.0
    %182 = vmatpush1.msra.mxu0 0.0
    %183 = vmatprep.subr.mxu0 0.0
    %184 = vmatpush1.msra.mxu0 0.0
    %185 = vmatprep.subr.mxu0 0.0
    %186 = vmatpush1.msra.mxu0 0.0
    %187 = vmatprep.subr.mxu0 0.0
    %188 = vmatpush1.msra.mxu0 0.0
    %189 = vmatprep.subr.mxu0 0.0
    %190 = vmatpush1.msra.mxu0 0.0
    %191 = vmatprep.subr.mxu0 0.0
    %192 = vmatpush1.msra.mxu0 0.0
    %193 = vmatprep.subr.mxu0 0.0
    %194 = vmatpush1.msra.mxu0 0.0
    %195 = vmatprep.subr.mxu0 0.0
    %196 = vmatpush1.msra.mxu0 0.0
    %197 = vmatprep.subr.mxu0 0.0
    %198 = vmatpush1.msra.mxu0 0.0
    %199 = vmatprep.subr.mxu0 0.0
    %200 = vmatpush1.msra.mxu0 0.0
    %201 = vmatprep.subr.mxu0 0.0
    %202 = vmatpush1.msra.mxu0 0.0
    %203 = vmatprep.subr.mxu0 0.0
    %204 = vmatpush1.msra.mxu0 0.0
    %205 = vmatprep.subr.mxu0 0.0
    %206 = vmatpush1.msra.mxu0 0.0
    %207 = vmatprep.subr.mxu0 0.0
    %208 = vmatpush1.msra.mxu0 0.0
    %209 = vmatprep.subr.mxu0 0.0
    %210 = vmatpush1.msra.mxu0 0.0
    %211 = vmatprep.mubr.f32.mxu0 0.0
    %212 = vmatmul.mubr.f32.gmra.mrb[0].mxu0 %v145
    %v213 = vpop.f32.mrb[0].mxu0
    %v214 = vadd.f32 0.0, %v213
    %v215 = vpop.f32.mrb[0].mxu0
    %216 = vdwg.mxu0
    %v217 = vadd.f32 %v142, %v214
    %v218 = vxor.u32 %v217, 2147483648
    %v219 = vmul.f32 %v218, 1.442695
    %v220 = vpow.pop %v219
    %v221 = vadd.f32 %v220, 1.0
    %v222 = vrcp.pop %v221
    %v223 = vmul.f32 1.0, %v222
    %v224 = vmul.f32 %v223, 2.0
    %v225 = vsub.f32 %v224, 1.0
    %v226 = vmul.f32 %v223, 0.0
    %228 = vrot.lane.b32.xlu0 %v225, 64
    %v229 = vpop.permute.xlu0 %228
    %v231 = vmul.f32 %v223, %v229
    %233 = vrot.lane.b32.xlu0 %v231, 32
    %v234 = vpop.permute.xlu0 %233
    %v236 = vadd.f32 %v226, %v234
    %v237 = vtanh.pop %v236
    %239 = vrot.lane.b32.xlu0 %v237, 64
    %v240 = vpop.permute.xlu0 %239
    %v242 = vmul.f32 %v223, %v240
    %v244 = vrot.slane %v130, 1
    %v246 = vsel %vm141, %v244, %v135
    %248 = vrot.lane.b32.xlu0 %v242, 32
    %v249 = vpop.permute.xlu0 %248
    %v250 = vsel %vm143, %v249, 0
    %252 = vmatprep.subr.mxu0 0.0
    %253 = vmatpush1.msra.mxu0 %v38
    %254 = vmatprep.subr.mxu0 0.0
    %255 = vmatpush1.msra.mxu0 %v39
    %256 = vmatprep.subr.mxu0 0.0
    %257 = vmatpush1.msra.mxu0 %v40
    %258 = vmatprep.subr.mxu0 0.0
    %259 = vmatpush1.msra.mxu0 %v41
    %260 = vmatprep.subr.mxu0 0.0
    %261 = vmatpush1.msra.mxu0 0.0
    %262 = vmatprep.subr.mxu0 0.0
    %263 = vmatpush1.msra.mxu0 0.0
    %264 = vmatprep.subr.mxu0 0.0
    %265 = vmatpush1.msra.mxu0 0.0
    %266 = vmatprep.subr.mxu0 0.0
    %267 = vmatpush1.msra.mxu0 0.0
    %268 = vmatprep.subr.mxu0 0.0
    %269 = vmatpush1.msra.mxu0 0.0
    %270 = vmatprep.subr.mxu0 0.0
    %271 = vmatpush1.msra.mxu0 0.0
    %272 = vmatprep.subr.mxu0 0.0
    %273 = vmatpush1.msra.mxu0 0.0
    %274 = vmatprep.subr.mxu0 0.0
    %275 = vmatpush1.msra.mxu0 0.0
    %276 = vmatprep.subr.mxu0 0.0
    %277 = vmatpush1.msra.mxu0 0.0
    %278 = vmatprep.subr.mxu0 0.0
    %279 = vmatpush1.msra.mxu0 0.0
    %280 = vmatprep.subr.mxu0 0.0
    %281 = vmatpush1.msra.mxu0 0.0
    %282 = vmatprep.subr.mxu0 0.0
    %283 = vmatpush1.msra.mxu0 0.0
    %284 = vmatprep.subr.mxu0 0.0
    %285 = vmatpush1.msra.mxu0 0.0
    %286 = vmatprep.subr.mxu0 0.0
    %287 = vmatpush1.msra.mxu0 0.0
    %288 = vmatprep.subr.mxu0 0.0
    %289 = vmatpush1.msra.mxu0 0.0
    %290 = vmatprep.subr.mxu0 0.0
    %291 = vmatpush1.msra.mxu0 0.0
    %292 = vmatprep.subr.mxu0 0.0
    %293 = vmatpush1.msra.mxu0 0.0
    %294 = vmatprep.subr.mxu0 0.0
    %295 = vmatpush1.msra.mxu0 0.0
    %296 = vmatprep.subr.mxu0 0.0
    %297 = vmatpush1.msra.mxu0 0.0
    %298 = vmatprep.subr.mxu0 0.0
    %299 = vmatpush1.msra.mxu0 0.0
    %300 = vmatprep.subr.mxu0 0.0
    %301 = vmatpush1.msra.mxu0 0.0
    %302 = vmatprep.subr.mxu0 0.0
    %303 = vmatpush1.msra.mxu0 0.0
    %304 = vmatprep.subr.mxu0 0.0
    %305 = vmatpush1.msra.mxu0 0.0
    %306 = vmatprep.subr.mxu0 0.0
    %307 = vmatpush1.msra.mxu0 0.0
    %308 = vmatprep.subr.mxu0 0.0
    %309 = vmatpush1.msra.mxu0 0.0
    %310 = vmatprep.subr.mxu0 0.0
    %311 = vmatpush1.msra.mxu0 0.0
    %312 = vmatprep.subr.mxu0 0.0
    %313 = vmatpush1.msra.mxu0 0.0
    %314 = vmatprep.subr.mxu0 0.0
    %315 = vmatpush1.msra.mxu0 0.0
    %316 = vmatprep.mubr.f32.mxu0 0.0
    %317 = vmatmul.mubr.f32.gmra.mrb[0].mxu0 %v250
    %v318 = vpop.f32.mrb[0].mxu0
    %v319 = vadd.f32 0.0, %v318
    %v320 = vpop.f32.mrb[0].mxu0
    %321 = vdwg.mxu0
    %v322 = vadd.f32 %v246, %v319
    %v323 = vxor.u32 %v322, 2147483648
    %v324 = vmul.f32 %v323, 1.442695
    %v325 = vpow.pop %v324
    %v326 = vadd.f32 %v325, 1.0
    %v327 = vrcp.pop %v326
    %v328 = vmul.f32 1.0, %v327
    %v329 = vmul.f32 %v328, 2.0
    %v330 = vsub.f32 %v329, 1.0
    %v331 = vmul.f32 %v328, %v236
    %333 = vrot.lane.b32.xlu0 %v330, 64
    %v334 = vpop.permute.xlu0 %333
    %v336 = vmul.f32 %v328, %v334
    %338 = vrot.lane.b32.xlu0 %v336, 32
    %v339 = vpop.permute.xlu0 %338
    %v341 = vadd.f32 %v331, %v339
    %v342 = vtanh.pop %v341
    %344 = vrot.lane.b32.xlu0 %v342, 64
    %v345 = vpop.permute.xlu0 %344
    %v347 = vmul.f32 %v328, %v345
    %v348 = vrot.slane %v130, 2
    %v350 = vrot.slane %v135, 1
    %v352 = vsel %vm141, %v348, %v350
    %354 = vrot.lane.b32.xlu0 %v347, 32
    %v355 = vpop.permute.xlu0 %354
    %v356 = vsel %vm143, %v355, 0
    %358 = vmatprep.subr.mxu0 0.0
    %359 = vmatpush1.msra.mxu0 %v38
    %360 = vmatprep.subr.mxu0 0.0
    %361 = vmatpush1.msra.mxu0 %v39
    %362 = vmatprep.subr.mxu0 0.0
    %363 = vmatpush1.msra.mxu0 %v40
    %364 = vmatprep.subr.mxu0 0.0
    %365 = vmatpush1.msra.mxu0 %v41
    %366 = vmatprep.subr.mxu0 0.0
    %367 = vmatpush1.msra.mxu0 0.0
    %368 = vmatprep.subr.mxu0 0.0
    %369 = vmatpush1.msra.mxu0 0.0
    %370 = vmatprep.subr.mxu0 0.0
    %371 = vmatpush1.msra.mxu0 0.0
    %372 = vmatprep.subr.mxu0 0.0
    %373 = vmatpush1.msra.mxu0 0.0
    %374 = vmatprep.subr.mxu0 0.0
    %375 = vmatpush1.msra.mxu0 0.0
    %376 = vmatprep.subr.mxu0 0.0
    %377 = vmatpush1.msra.mxu0 0.0
    %378 = vmatprep.subr.mxu0 0.0
    %379 = vmatpush1.msra.mxu0 0.0
    %380 = vmatprep.subr.mxu0 0.0
    %381 = vmatpush1.msra.mxu0 0.0
    %382 = vmatprep.subr.mxu0 0.0
    %383 = vmatpush1.msra.mxu0 0.0
    %384 = vmatprep.subr.mxu0 0.0
    %385 = vmatpush1.msra.mxu0 0.0
    %386 = vmatprep.subr.mxu0 0.0
    %387 = vmatpush1.msra.mxu0 0.0
    %388 = vmatprep.subr.mxu0 0.0
    %389 = vmatpush1.msra.mxu0 0.0
    %390 = vmatprep.subr.mxu0 0.0
    %391 = vmatpush1.msra.mxu0 0.0
    %392 = vmatprep.subr.mxu0 0.0
    %393 = vmatpush1.msra.mxu0 0.0
    %394 = vmatprep.subr.mxu0 0.0
    %395 = vmatpush1.msra.mxu0 0.0
    %396 = vmatprep.subr.mxu0 0.0
    %397 = vmatpush1.msra.mxu0 0.0
    %398 = vmatprep.subr.mxu0 0.0
    %399 = vmatpush1.msra.mxu0 0.0
    %400 = vmatprep.subr.mxu0 0.0
    %401 = vmatpush1.msra.mxu0 0.0
    %402 = vmatprep.subr.mxu0 0.0
    %403 = vmatpush1.msra.mxu0 0.0
    %404 = vmatprep.subr.mxu0 0.0
    %405 = vmatpush1.msra.mxu0 0.0
    %406 = vmatprep.subr.mxu0 0.0
    %407 = vmatpush1.msra.mxu0 0.0
    %408 = vmatprep.subr.mxu0 0.0
    %409 = vmatpush1.msra.mxu0 0.0
    %410 = vmatprep.subr.mxu0 0.0
    %411 = vmatpush1.msra.mxu0 0.0
    %412 = vmatprep.subr.mxu0 0.0
    %413 = vmatpush1.msra.mxu0 0.0
    %414 = vmatprep.subr.mxu0 0.0
    %415 = vmatpush1.msra.mxu0 0.0
    %416 = vmatprep.subr.mxu0 0.0
    %417 = vmatpush1.msra.mxu0 0.0
    %418 = vmatprep.subr.mxu0 0.0
    %419 = vmatpush1.msra.mxu0 0.0
    %420 = vmatprep.subr.mxu0 0.0
    %421 = vmatpush1.msra.mxu0 0.0
    %422 = vmatprep.mubr.f32.mxu0 0.0
    %423 = vmatmul.mubr.f32.gmra.mrb[0].mxu0 %v356
    %v424 = vpop.f32.mrb[0].mxu0
    %v425 = vadd.f32 0.0, %v424
    %v426 = vpop.f32.mrb[0].mxu0
    %427 = vdwg.mxu0
    %v428 = vadd.f32 %v352, %v425
    %v429 = vxor.u32 %v428, 2147483648
    %v430 = vmul.f32 %v429, 1.442695
    %v431 = vpow.pop %v430
    %v432 = vadd.f32 %v431, 1.0
    %v433 = vrcp.pop %v432
    %v434 = vmul.f32 1.0, %v433
    %v435 = vmul.f32 %v434, 2.0
    %v436 = vsub.f32 %v435, 1.0
    %v437 = vmul.f32 %v434, %v341
    %439 = vrot.lane.b32.xlu0 %v436, 64
    %v440 = vpop.permute.xlu0 %439
    %v442 = vmul.f32 %v434, %v440
    %444 = vrot.lane.b32.xlu0 %v442, 32
    %v445 = vpop.permute.xlu0 %444
    %v447 = vadd.f32 %v437, %v445
    %v448 = vtanh.pop %v447
    %450 = vrot.lane.b32.xlu0 %v448, 64
    %v451 = vpop.permute.xlu0 %450
    %v453 = vmul.f32 %v434, %v451
    %v454 = vrot.slane %v130, 3
    %v456 = vrot.slane %v135, 2
    %v458 = vsel %vm141, %v454, %v456
    %460 = vrot.lane.b32.xlu0 %v453, 32
    %v461 = vpop.permute.xlu0 %460
    %v462 = vsel %vm143, %v461, 0
    %464 = vmatprep.subr.mxu0 0.0
    %465 = vmatpush1.msra.mxu0 %v38
    %466 = vmatprep.subr.mxu0 0.0
    %467 = vmatpush1.msra.mxu0 %v39
    %468 = vmatprep.subr.mxu0 0.0
    %469 = vmatpush1.msra.mxu0 %v40
    %470 = vmatprep.subr.mxu0 0.0
    %471 = vmatpush1.msra.mxu0 %v41
    %472 = vmatprep.subr.mxu0 0.0
    %473 = vmatpush1.msra.mxu0 0.0
    %474 = vmatprep.subr.mxu0 0.0
    %475 = vmatpush1.msra.mxu0 0.0
    %476 = vmatprep.subr.mxu0 0.0
    %477 = vmatpush1.msra.mxu0 0.0
    %478 = vmatprep.subr.mxu0 0.0
    %479 = vmatpush1.msra.mxu0 0.0
    %480 = vmatprep.subr.mxu0 0.0
    %481 = vmatpush1.msra.mxu0 0.0
    %482 = vmatprep.subr.mxu0 0.0
    %483 = vmatpush1.msra.mxu0 0.0
    %484 = vmatprep.subr.mxu0 0.0
    %485 = vmatpush1.msra.mxu0 0.0
    %486 = vmatprep.subr.mxu0 0.0
    %487 = vmatpush1.msra.mxu0 0.0
    %488 = vmatprep.subr.mxu0 0.0
    %489 = vmatpush1.msra.mxu0 0.0
    %490 = vmatprep.subr.mxu0 0.0
    %491 = vmatpush1.msra.mxu0 0.0
    %492 = vmatprep.subr.mxu0 0.0
    %493 = vmatpush1.msra.mxu0 0.0
    %494 = vmatprep.subr.mxu0 0.0
    %495 = vmatpush1.msra.mxu0 0.0
    %496 = vmatprep.subr.mxu0 0.0
    %497 = vmatpush1.msra.mxu0 0.0
    %498 = vmatprep.subr.mxu0 0.0
    %499 = vmatpush1.msra.mxu0 0.0
    %500 = vmatprep.subr.mxu0 0.0
    %501 = vmatpush1.msra.mxu0 0.0
    %502 = vmatprep.subr.mxu0 0.0
    %503 = vmatpush1.msra.mxu0 0.0
    %504 = vmatprep.subr.mxu0 0.0
    %505 = vmatpush1.msra.mxu0 0.0
    %506 = vmatprep.subr.mxu0 0.0
    %507 = vmatpush1.msra.mxu0 0.0
    %508 = vmatprep.subr.mxu0 0.0
    %509 = vmatpush1.msra.mxu0 0.0
    %510 = vmatprep.subr.mxu0 0.0
    %511 = vmatpush1.msra.mxu0 0.0
    %512 = vmatprep.subr.mxu0 0.0
    %513 = vmatpush1.msra.mxu0 0.0
    %514 = vmatprep.subr.mxu0 0.0
    %515 = vmatpush1.msra.mxu0 0.0
    %516 = vmatprep.subr.mxu0 0.0
    %517 = vmatpush1.msra.mxu0 0.0
    %518 = vmatprep.subr.mxu0 0.0
    %519 = vmatpush1.msra.mxu0 0.0
    %520 = vmatprep.subr.mxu0 0.0
    %521 = vmatpush1.msra.mxu0 0.0
    %522 = vmatprep.subr.mxu0 0.0
    %523 = vmatpush1.msra.mxu0 0.0
    %524 = vmatprep.subr.mxu0 0.0
    %525 = vmatpush1.msra.mxu0 0.0
    %526 = vmatprep.subr.mxu0 0.0
    %527 = vmatpush1.msra.mxu0 0.0
    %528 = vmatprep.mubr.f32.mxu0 0.0
    %529 = vmatmul.mubr.f32.gmra.mrb[0].mxu0 %v462
    %v530 = vpop.f32.mrb[0].mxu0
    %v531 = vadd.f32 0.0, %v530
    %v532 = vpop.f32.mrb[0].mxu0
    %533 = vdwg.mxu0
    %v534 = vadd.f32 %v458, %v531
    %v535 = vxor.u32 %v534, 2147483648
    %v536 = vmul.f32 %v535, 1.442695
    %v537 = vpow.pop %v536
    %v538 = vadd.f32 %v537, 1.0
    %v539 = vrcp.pop %v538
    %v540 = vmul.f32 1.0, %v539
    %v541 = vmul.f32 %v540, 2.0
    %v542 = vsub.f32 %v541, 1.0
    %v543 = vmul.f32 %v540, %v447
    %545 = vrot.lane.b32.xlu0 %v542, 64
    %v546 = vpop.permute.xlu0 %545
    %v548 = vmul.f32 %v540, %v546
    %550 = vrot.lane.b32.xlu0 %v548, 32
    %v551 = vpop.permute.xlu0 %550
    %v553 = vadd.f32 %v543, %v551
    %v554 = vtanh.pop %v553
    %556 = vrot.lane.b32.xlu0 %v554, 64
    %v557 = vpop.permute.xlu0 %556
    %v559 = vmul.f32 %v540, %v557
    %v560 = vrot.slane %v130, 4
    %v562 = vrot.slane %v135, 3
    %v564 = vsel %vm141, %v560, %v562
    %566 = vrot.lane.b32.xlu0 %v559, 32
    %v567 = vpop.permute.xlu0 %566
    %v568 = vsel %vm143, %v567, 0
    %570 = vmatprep.subr.mxu0 0.0
    %571 = vmatpush1.msra.mxu0 %v38
    %572 = vmatprep.subr.mxu0 0.0
    %573 = vmatpush1.msra.mxu0 %v39
    %574 = vmatprep.subr.mxu0 0.0
    %575 = vmatpush1.msra.mxu0 %v40
    %576 = vmatprep.subr.mxu0 0.0
    %577 = vmatpush1.msra.mxu0 %v41
    %578 = vmatprep.subr.mxu0 0.0
    %579 = vmatpush1.msra.mxu0 0.0
    %580 = vmatprep.subr.mxu0 0.0
    %581 = vmatpush1.msra.mxu0 0.0
    %582 = vmatprep.subr.mxu0 0.0
    %583 = vmatpush1.msra.mxu0 0.0
    %584 = vmatprep.subr.mxu0 0.0
    %585 = vmatpush1.msra.mxu0 0.0
    %586 = vmatprep.subr.mxu0 0.0
    %587 = vmatpush1.msra.mxu0 0.0
    %588 = vmatprep.subr.mxu0 0.0
    %589 = vmatpush1.msra.mxu0 0.0
    %590 = vmatprep.subr.mxu0 0.0
    %591 = vmatpush1.msra.mxu0 0.0
    %592 = vmatprep.subr.mxu0 0.0
    %593 = vmatpush1.msra.mxu0 0.0
    %594 = vmatprep.subr.mxu0 0.0
    %595 = vmatpush1.msra.mxu0 0.0
    %596 = vmatprep.subr.mxu0 0.0
    %597 = vmatpush1.msra.mxu0 0.0
    %598 = vmatprep.subr.mxu0 0.0
    %599 = vmatpush1.msra.mxu0 0.0
    %600 = vmatprep.subr.mxu0 0.0
    %601 = vmatpush1.msra.mxu0 0.0
    %602 = vmatprep.subr.mxu0 0.0
    %603 = vmatpush1.msra.mxu0 0.0
    %604 = vmatprep.subr.mxu0 0.0
    %605 = vmatpush1.msra.mxu0 0.0
    %606 = vmatprep.subr.mxu0 0.0
    %607 = vmatpush1.msra.mxu0 0.0
    %608 = vmatprep.subr.mxu0 0.0
    %609 = vmatpush1.msra.mxu0 0.0
    %610 = vmatprep.subr.mxu0 0.0
    %611 = vmatpush1.msra.mxu0 0.0
    %612 = vmatprep.subr.mxu0 0.0
    %613 = vmatpush1.msra.mxu0 0.0
    %614 = vmatprep.subr.mxu0 0.0
    %615 = vmatpush1.msra.mxu0 0.0
    %616 = vmatprep.subr.mxu0 0.0
    %617 = vmatpush1.msra.mxu0 0.0
    %618 = vmatprep.subr.mxu0 0.0
    %619 = vmatpush1.msra.mxu0 0.0
    %620 = vmatprep.subr.mxu0 0.0
    %621 = vmatpush1.msra.mxu0 0.0
    %622 = vmatprep.subr.mxu0 0.0
    %623 = vmatpush1.msra.mxu0 0.0
    %624 = vmatprep.subr.mxu0 0.0
    %625 = vmatpush1.msra.mxu0 0.0
    %626 = vmatprep.subr.mxu0 0.0
    %627 = vmatpush1.msra.mxu0 0.0
    %628 = vmatprep.subr.mxu0 0.0
    %629 = vmatpush1.msra.mxu0 0.0
    %630 = vmatprep.subr.mxu0 0.0
    %631 = vmatpush1.msra.mxu0 0.0
    %632 = vmatprep.subr.mxu0 0.0
    %633 = vmatpush1.msra.mxu0 0.0
    %634 = vmatprep.mubr.f32.mxu0 0.0
    %635 = vmatmul.mubr.f32.gmra.mrb[0].mxu0 %v568
    %v636 = vpop.f32.mrb[0].mxu0
    %v637 = vadd.f32 0.0, %v636
    %v638 = vpop.f32.mrb[0].mxu0
    %639 = vdwg.mxu0
    %v640 = vadd.f32 %v564, %v637
    %v641 = vxor.u32 %v640, 2147483648
    %v642 = vmul.f32 %v641, 1.442695
    %v643 = vpow.pop %v642
    %v644 = vadd.f32 %v643, 1.0
    %v645 = vrcp.pop %v644
    %v646 = vmul.f32 1.0, %v645
    %v647 = vmul.f32 %v646, 2.0
    %v648 = vsub.f32 %v647, 1.0
    %v649 = vmul.f32 %v646, %v553
    %651 = vrot.lane.b32.xlu0 %v648, 64
    %v652 = vpop.permute.xlu0 %651
    %v654 = vmul.f32 %v646, %v652
    %656 = vrot.lane.b32.xlu0 %v654, 32
    %v657 = vpop.permute.xlu0 %656
    %v659 = vadd.f32 %v649, %v657
    %v660 = vtanh.pop %v659
    %662 = vrot.lane.b32.xlu0 %v660, 64
    %v663 = vpop.permute.xlu0 %662
    %v665 = vmul.f32 %v646, %v663
    %v666 = vrot.slane %v130, 5
    %v668 = vrot.slane %v135, 4
    %v670 = vsel %vm141, %v666, %v668
    %672 = vrot.lane.b32.xlu0 %v665, 32
    %v673 = vpop.permute.xlu0 %672
    %v674 = vsel %vm143, %v673, 0
    %676 = vmatprep.subr.mxu0 0.0
    %677 = vmatpush1.msra.mxu0 %v38
    %678 = vmatprep.subr.mxu0 0.0
    %679 = vmatpush1.msra.mxu0 %v39
    %680 = vmatprep.subr.mxu0 0.0
    %681 = vmatpush1.msra.mxu0 %v40
    %682 = vmatprep.subr.mxu0 0.0
    %683 = vmatpush1.msra.mxu0 %v41
    %684 = vmatprep.subr.mxu0 0.0
    %685 = vmatpush1.msra.mxu0 0.0
    %686 = vmatprep.subr.mxu0 0.0
    %687 = vmatpush1.msra.mxu0 0.0
    %688 = vmatprep.subr.mxu0 0.0
    %689 = vmatpush1.msra.mxu0 0.0
    %690 = vmatprep.subr.mxu0 0.0
    %691 = vmatpush1.msra.mxu0 0.0
    %692 = vmatprep.subr.mxu0 0.0
    %693 = vmatpush1.msra.mxu0 0.0
    %694 = vmatprep.subr.mxu0 0.0
    %695 = vmatpush1.msra.mxu0 0.0
    %696 = vmatprep.subr.mxu0 0.0
    %697 = vmatpush1.msra.mxu0 0.0
    %698 = vmatprep.subr.mxu0 0.0
    %699 = vmatpush1.msra.mxu0 0.0
    %700 = vmatprep.subr.mxu0 0.0
    %701 = vmatpush1.msra.mxu0 0.0
    %702 = vmatprep.subr.mxu0 0.0
    %703 = vmatpush1.msra.mxu0 0.0
    %704 = vmatprep.subr.mxu0 0.0
    %705 = vmatpush1.msra.mxu0 0.0
    %706 = vmatprep.subr.mxu0 0.0
    %707 = vmatpush1.msra.mxu0 0.0
    %708 = vmatprep.subr.mxu0 0.0
    %709 = vmatpush1.msra.mxu0 0.0
    %710 = vmatprep.subr.mxu0 0.0
    %711 = vmatpush1.msra.mxu0 0.0
    %712 = vmatprep.subr.mxu0 0.0
    %713 = vmatpush1.msra.mxu0 0.0
    %714 = vmatprep.subr.mxu0 0.0
    %715 = vmatpush1.msra.mxu0 0.0
    %716 = vmatprep.subr.mxu0 0.0
    %717 = vmatpush1.msra.mxu0 0.0
    %718 = vmatprep.subr.mxu0 0.0
    %719 = vmatpush1.msra.mxu0 0.0
    %720 = vmatprep.subr.mxu0 0.0
    %721 = vmatpush1.msra.mxu0 0.0
    %722 = vmatprep.subr.mxu0 0.0
    %723 = vmatpush1.msra.mxu0 0.0
    %724 = vmatprep.subr.mxu0 0.0
    %725 = vmatpush1.msra.mxu0 0.0
    %726 = vmatprep.subr.mxu0 0.0
    %727 = vmatpush1.msra.mxu0 0.0
    %728 = vmatprep.subr.mxu0 0.0
    %729 = vmatpush1.msra.mxu0 0.0
    %730 = vmatprep.subr.mxu0 0.0
    %731 = vmatpush1.msra.mxu0 0.0
    %732 = vmatprep.subr.mxu0 0.0
    %733 = vmatpush1.msra.mxu0 0.0
    %734 = vmatprep.subr.mxu0 0.0
    %735 = vmatpush1.msra.mxu0 0.0
    %736 = vmatprep.subr.mxu0 0.0
    %737 = vmatpush1.msra.mxu0 0.0
    %738 = vmatprep.subr.mxu0 0.0
    %739 = vmatpush1.msra.mxu0 0.0
    %740 = vmatprep.mubr.f32.mxu0 0.0
    %741 = vmatmul.mubr.f32.gmra.mrb[0].mxu0 %v674
    %v742 = vpop.f32.mrb[0].mxu0
    %v743 = vadd.f32 0.0, %v742
    %v744 = vpop.f32.mrb[0].mxu0
    %745 = vdwg.mxu0
    %v746 = vadd.f32 %v670, %v743
    %v747 = vxor.u32 %v746, 2147483648
    %v748 = vmul.f32 %v747, 1.442695
    %v749 = vpow.pop %v748
    %v750 = vadd.f32 %v749, 1.0
    %v751 = vrcp.pop %v750
    %v752 = vmul.f32 1.0, %v751
    %v753 = vmul.f32 %v752, 2.0
    %v754 = vsub.f32 %v753, 1.0
    %v755 = vmul.f32 %v752, %v659
    %757 = vrot.lane.b32.xlu0 %v754, 64
    %v758 = vpop.permute.xlu0 %757
    %v760 = vmul.f32 %v752, %v758
    %762 = vrot.lane.b32.xlu0 %v760, 32
    %v763 = vpop.permute.xlu0 %762
    %v765 = vadd.f32 %v755, %v763
    %v766 = vtanh.pop %v765
    %768 = vrot.lane.b32.xlu0 %v766, 64
    %v769 = vpop.permute.xlu0 %768
    %v771 = vmul.f32 %v752, %v769
    %v772 = vrot.slane %v130, 6
    %v774 = vrot.slane %v135, 5
    %v776 = vsel %vm141, %v772, %v774
    %778 = vrot.lane.b32.xlu0 %v771, 32
    %v779 = vpop.permute.xlu0 %778
    %v780 = vsel %vm143, %v779, 0
    %782 = vmatprep.subr.mxu0 0.0
    %783 = vmatpush1.msra.mxu0 %v38
    %784 = vmatprep.subr.mxu0 0.0
    %785 = vmatpush1.msra.mxu0 %v39
    %786 = vmatprep.subr.mxu0 0.0
    %787 = vmatpush1.msra.mxu0 %v40
    %788 = vmatprep.subr.mxu0 0.0
    %789 = vmatpush1.msra.mxu0 %v41
    %790 = vmatprep.subr.mxu0 0.0
    %791 = vmatpush1.msra.mxu0 0.0
    %792 = vmatprep.subr.mxu0 0.0
    %793 = vmatpush1.msra.mxu0 0.0
    %794 = vmatprep.subr.mxu0 0.0
    %795 = vmatpush1.msra.mxu0 0.0
    %796 = vmatprep.subr.mxu0 0.0
    %797 = vmatpush1.msra.mxu0 0.0
    %798 = vmatprep.subr.mxu0 0.0
    %799 = vmatpush1.msra.mxu0 0.0
    %800 = vmatprep.subr.mxu0 0.0
    %801 = vmatpush1.msra.mxu0 0.0
    %802 = vmatprep.subr.mxu0 0.0
    %803 = vmatpush1.msra.mxu0 0.0
    %804 = vmatprep.subr.mxu0 0.0
    %805 = vmatpush1.msra.mxu0 0.0
    %806 = vmatprep.subr.mxu0 0.0
    %807 = vmatpush1.msra.mxu0 0.0
    %808 = vmatprep.subr.mxu0 0.0
    %809 = vmatpush1.msra.mxu0 0.0
    %810 = vmatprep.subr.mxu0 0.0
    %811 = vmatpush1.msra.mxu0 0.0
    %812 = vmatprep.subr.mxu0 0.0
    %813 = vmatpush1.msra.mxu0 0.0
    %814 = vmatprep.subr.mxu0 0.0
    %815 = vmatpush1.msra.mxu0 0.0
    %816 = vmatprep.subr.mxu0 0.0
    %817 = vmatpush1.msra.mxu0 0.0
    %818 = vmatprep.subr.mxu0 0.0
    %819 = vmatpush1.msra.mxu0 0.0
    %820 = vmatprep.subr.mxu0 0.0
    %821 = vmatpush1.msra.mxu0 0.0
    %822 = vmatprep.subr.mxu0 0.0
    %823 = vmatpush1.msra.mxu0 0.0
    %824 = vmatprep.subr.mxu0 0.0
    %825 = vmatpush1.msra.mxu0 0.0
    %826 = vmatprep.subr.mxu0 0.0
    %827 = vmatpush1.msra.mxu0 0.0
    %828 = vmatprep.subr.mxu0 0.0
    %829 = vmatpush1.msra.mxu0 0.0
    %830 = vmatprep.subr.mxu0 0.0
    %831 = vmatpush1.msra.mxu0 0.0
    %832 = vmatprep.subr.mxu0 0.0
    %833 = vmatpush1.msra.mxu0 0.0
    %834 = vmatprep.subr.mxu0 0.0
    %835 = vmatpush1.msra.mxu0 0.0
    %836 = vmatprep.subr.mxu0 0.0
    %837 = vmatpush1.msra.mxu0 0.0
    %838 = vmatprep.subr.mxu0 0.0
    %839 = vmatpush1.msra.mxu0 0.0
    %840 = vmatprep.subr.mxu0 0.0
    %841 = vmatpush1.msra.mxu0 0.0
    %842 = vmatprep.subr.mxu0 0.0
    %843 = vmatpush1.msra.mxu0 0.0
    %844 = vmatprep.subr.mxu0 0.0
    %845 = vmatpush1.msra.mxu0 0.0
    %846 = vmatprep.mubr.f32.mxu0 0.0
    %847 = vmatmul.mubr.f32.gmra.mrb[0].mxu0 %v780
    %v848 = vpop.f32.mrb[0].mxu0
    %v849 = vadd.f32 0.0, %v848
    %v850 = vpop.f32.mrb[0].mxu0
    %851 = vdwg.mxu0
    %v852 = vadd.f32 %v776, %v849
    %v853 = vxor.u32 %v852, 2147483648
    %v854 = vmul.f32 %v853, 1.442695
    %v855 = vpow.pop %v854
    %v856 = vadd.f32 %v855, 1.0
    %v857 = vrcp.pop %v856
    %v858 = vmul.f32 1.0, %v857
    %v859 = vmul.f32 %v858, 2.0
    %v860 = vsub.f32 %v859, 1.0
    %v861 = vmul.f32 %v858, %v765
    %863 = vrot.lane.b32.xlu0 %v860, 64
    %v864 = vpop.permute.xlu0 %863
    %v866 = vmul.f32 %v858, %v864
    %868 = vrot.lane.b32.xlu0 %v866, 32
    %v869 = vpop.permute.xlu0 %868
    %v871 = vadd.f32 %v861, %v869
    %v872 = vtanh.pop %v871
    %874 = vrot.lane.b32.xlu0 %v872, 64
    %v875 = vpop.permute.xlu0 %874
    %v877 = vmul.f32 %v858, %v875
    %v878 = vrot.slane %v130, 7
    %v880 = vrot.slane %v135, 6
    %v882 = vsel %vm141, %v878, %v880
    %884 = vrot.lane.b32.xlu0 %v877, 32
    %v885 = vpop.permute.xlu0 %884
    %v886 = vsel %vm143, %v885, 0
    %888 = vmatprep.subr.mxu0 0.0
    %889 = vmatpush1.msra.mxu0 %v38
    %890 = vmatprep.subr.mxu0 0.0
    %891 = vmatpush1.msra.mxu0 %v39
    %892 = vmatprep.subr.mxu0 0.0
    %893 = vmatpush1.msra.mxu0 %v40
    %894 = vmatprep.subr.mxu0 0.0
    %895 = vmatpush1.msra.mxu0 %v41
    %896 = vmatprep.subr.mxu0 0.0
    %897 = vmatpush1.msra.mxu0 0.0
    %898 = vmatprep.subr.mxu0 0.0
    %899 = vmatpush1.msra.mxu0 0.0
    %900 = vmatprep.subr.mxu0 0.0
    %901 = vmatpush1.msra.mxu0 0.0
    %902 = vmatprep.subr.mxu0 0.0
    %903 = vmatpush1.msra.mxu0 0.0
    %904 = vmatprep.subr.mxu0 0.0
    %905 = vmatpush1.msra.mxu0 0.0
    %906 = vmatprep.subr.mxu0 0.0
    %907 = vmatpush1.msra.mxu0 0.0
    %908 = vmatprep.subr.mxu0 0.0
    %909 = vmatpush1.msra.mxu0 0.0
    %910 = vmatprep.subr.mxu0 0.0
    %911 = vmatpush1.msra.mxu0 0.0
    %912 = vmatprep.subr.mxu0 0.0
    %913 = vmatpush1.msra.mxu0 0.0
    %914 = vmatprep.subr.mxu0 0.0
    %915 = vmatpush1.msra.mxu0 0.0
    %916 = vmatprep.subr.mxu0 0.0
    %917 = vmatpush1.msra.mxu0 0.0
    %918 = vmatprep.subr.mxu0 0.0
    %919 = vmatpush1.msra.mxu0 0.0
    %920 = vmatprep.subr.mxu0 0.0
    %921 = vmatpush1.msra.mxu0 0.0
    %922 = vmatprep.subr.mxu0 0.0
    %923 = vmatpush1.msra.mxu0 0.0
    %924 = vmatprep.subr.mxu0 0.0
    %925 = vmatpush1.msra.mxu0 0.0
    %926 = vmatprep.subr.mxu0 0.0
    %927 = vmatpush1.msra.mxu0 0.0
    %928 = vmatprep.subr.mxu0 0.0
    %929 = vmatpush1.msra.mxu0 0.0
    %930 = vmatprep.subr.mxu0 0.0
    %931 = vmatpush1.msra.mxu0 0.0
    %932 = vmatprep.subr.mxu0 0.0
    %933 = vmatpush1.msra.mxu0 0.0
    %934 = vmatprep.subr.mxu0 0.0
    %935 = vmatpush1.msra.mxu0 0.0
    %936 = vmatprep.subr.mxu0 0.0
    %937 = vmatpush1.msra.mxu0 0.0
    %938 = vmatprep.subr.mxu0 0.0
    %939 = vmatpush1.msra.mxu0 0.0
    %940 = vmatprep.subr.mxu0 0.0
    %941 = vmatpush1.msra.mxu0 0.0
    %942 = vmatprep.subr.mxu0 0.0
    %943 = vmatpush1.msra.mxu0 0.0
    %944 = vmatprep.subr.mxu0 0.0
    %945 = vmatpush1.msra.mxu0 0.0
    %946 = vmatprep.subr.mxu0 0.0
    %947 = vmatpush1.msra.mxu0 0.0
    %948 = vmatprep.subr.mxu0 0.0
    %949 = vmatpush1.msra.mxu0 0.0
    %950 = vmatprep.subr.mxu0 0.0
    %951 = vmatpush1.msra.mxu0 0.0
    %952 = vmatprep.mubr.f32.mxu0 0.0
    %953 = vmatmul.mubr.f32.gmra.mrb[0].mxu0 %v886
    %v954 = vpop.f32.mrb[0].mxu0
    %v955 = vadd.f32 0.0, %v954
    %v956 = vpop.f32.mrb[0].mxu0
    %957 = vdwg.mxu0
    %v958 = vadd.f32 %v882, %v955
    %v959 = vxor.u32 %v958, 2147483648
    %v960 = vmul.f32 %v959, 1.442695
    %v961 = vpow.pop %v960
    %v962 = vadd.f32 %v961, 1.0
    %v963 = vrcp.pop %v962
    %v964 = vmul.f32 1.0, %v963
    %v965 = vmul.f32 %v964, 2.0
    %v966 = vsub.f32 %v965, 1.0
    %v967 = vmul.f32 %v964, %v871
    %969 = vrot.lane.b32.xlu0 %v966, 64
    %v970 = vpop.permute.xlu0 %969
    %v972 = vmul.f32 %v964, %v970
    %974 = vrot.lane.b32.xlu0 %v972, 32
    %v975 = vpop.permute.xlu0 %974
    %v977 = vadd.f32 %v967, %v975
    %v978 = vtanh.pop %v977
    %980 = vrot.lane.b32.xlu0 %v978, 64
    %v981 = vpop.permute.xlu0 %980
    %v983 = vmul.f32 %v964, %v981
    %v984 = vrot.slane %v347, 7
    %v986 = vrot.slane %v453, 6
    %v988 = vrot.slane %v559, 5
    %v990 = vrot.slane %v665, 4
    %v992 = vrot.slane %v771, 3
    %v994 = vrot.slane %v877, 2
    %v997 = vrot.slane %v983, 1
    %v999 = vsel %vm141, %v242, %v984
    %vm1000 = vcmask 1041408
    %v1001 = vsel %vm1000, %v999, %v986
    %vm1002 = vcmask 1042432
    %v1003 = vsel %vm1002, %v1001, %v988
    %vm1004 = vcmask 1043456
    %v1005 = vsel %vm1004, %v1003, %v990
    %vm1006 = vcmask 1044480
    %v1007 = vsel %vm1006, %v1005, %v992
    %vm1008 = vcmask 1045504
    %v1009 = vsel %vm1008, %v1007, %v994
    %vm1010 = vcmask 1046528
    %v1011 = vsel %vm1010, %v1009, %v997
    %v1012 = vrot.slane %v242, 1
    %v1014 = vrot.slane %v453, 7
    %v1016 = vrot.slane %v559, 6
    %v1018 = vrot.slane %v665, 5
    %v1020 = vrot.slane %v771, 4
    %v1022 = vrot.slane %v877, 3
    %v1024 = vrot.slane %v983, 2
    %v1026 = vsel %vm141, %v1012, %v347
    %v1027 = vsel %vm1000, %v1026, %v1014
    %v1028 = vsel %vm1002, %v1027, %v1016
    %v1029 = vsel %vm1004, %v1028, %v1018
    %v1030 = vsel %vm1006, %v1029, %v1020
    %v1031 = vsel %vm1008, %v1030, %v1022
    %v1032 = vsel %vm1010, %v1031, %v1024
    %v1034 = vlaneseq
    %v1035 = vshrl.u32 %v1034, 7
    %v1036 = vsub.s32 0, %v1035
    %v1037 = vrot.slane %v47, %v1036
    %1041 = vrot.lane.b32.xlu0 %v1011, 32
    %v1042 = vpop.permute.xlu0 %1041
    %1043 = vrot.lane.b32.xlu0 %v1032, 32
    %v1044 = vpop.permute.xlu0 %1043
    %v1045 = vsel %vm143, %v1042, 0
    %v1047 = vsel %vm143, %v1044, 0
    %1049 = vmatprep.subr.mxu0 0.0
    %1050 = vmatpush1.msra.mxu0 %v43
    %1051 = vmatprep.subr.mxu0 0.0
    %1052 = vmatpush1.msra.mxu0 %v44
    %1053 = vmatprep.subr.mxu0 0.0
    %1054 = vmatpush1.msra.mxu0 %v45
    %1055 = vmatprep.subr.mxu0 0.0
    %1056 = vmatpush1.msra.mxu0 %v46
    %1057 = vmatprep.subr.mxu0 0.0
    %1058 = vmatpush1.msra.mxu0 0.0
    %1059 = vmatprep.subr.mxu0 0.0
    %1060 = vmatpush1.msra.mxu0 0.0
    %1061 = vmatprep.subr.mxu0 0.0
    %1062 = vmatpush1.msra.mxu0 0.0
    %1063 = vmatprep.subr.mxu0 0.0
    %1064 = vmatpush1.msra.mxu0 0.0
    %1065 = vmatprep.subr.mxu0 0.0
    %1066 = vmatpush1.msra.mxu0 0.0
    %1067 = vmatprep.subr.mxu0 0.0
    %1068 = vmatpush1.msra.mxu0 0.0
    %1069 = vmatprep.subr.mxu0 0.0
    %1070 = vmatpush1.msra.mxu0 0.0
    %1071 = vmatprep.subr.mxu0 0.0
    %1072 = vmatpush1.msra.mxu0 0.0
    %1073 = vmatprep.subr.mxu0 0.0
    %1074 = vmatpush1.msra.mxu0 0.0
    %1075 = vmatprep.subr.mxu0 0.0
    %1076 = vmatpush1.msra.mxu0 0.0
    %1077 = vmatprep.subr.mxu0 0.0
    %1078 = vmatpush1.msra.mxu0 0.0
    %1079 = vmatprep.subr.mxu0 0.0
    %1080 = vmatpush1.msra.mxu0 0.0
    %1081 = vmatprep.subr.mxu0 0.0
    %1082 = vmatpush1.msra.mxu0 0.0
    %1083 = vmatprep.subr.mxu0 0.0
    %1084 = vmatpush1.msra.mxu0 0.0
    %1085 = vmatprep.subr.mxu0 0.0
    %1086 = vmatpush1.msra.mxu0 0.0
    %1087 = vmatprep.subr.mxu0 0.0
    %1088 = vmatpush1.msra.mxu0 0.0
    %1089 = vmatprep.subr.mxu0 0.0
    %1090 = vmatpush1.msra.mxu0 0.0
    %1091 = vmatprep.subr.mxu0 0.0
    %1092 = vmatpush1.msra.mxu0 0.0
    %1093 = vmatprep.subr.mxu0 0.0
    %1094 = vmatpush1.msra.mxu0 0.0
    %1095 = vmatprep.subr.mxu0 0.0
    %1096 = vmatpush1.msra.mxu0 0.0
    %1097 = vmatprep.subr.mxu0 0.0
    %1098 = vmatpush1.msra.mxu0 0.0
    %1099 = vmatprep.subr.mxu0 0.0
    %1100 = vmatpush1.msra.mxu0 0.0
    %1101 = vmatprep.subr.mxu0 0.0
    %1102 = vmatpush1.msra.mxu0 0.0
    %1103 = vmatprep.subr.mxu0 0.0
    %1104 = vmatpush1.msra.mxu0 0.0
    %1105 = vmatprep.subr.mxu0 0.0
    %1106 = vmatpush1.msra.mxu0 0.0
    %1107 = vmatprep.subr.mxu0 0.0
    %1108 = vmatpush1.msra.mxu0 0.0
    %1109 = vmatprep.subr.mxu0 0.0
    %1110 = vmatpush1.msra.mxu0 0.0
    %1111 = vmatprep.subr.mxu0 0.0
    %1112 = vmatpush1.msra.mxu0 0.0
    %1113 = vmatprep.mubr.f32.mxu0 0.0
    %1114 = vmatmul.mubr.f32.gmra.mrb[0].mxu0 %v1045
    %v1115 = vpop.f32.mrb[0].mxu0
    %v1116 = vadd.f32 %v1037, %v1115
    %v1117 = vpop.f32.mrb[0].mxu0
    %1118 = vmatprep.mubr.f32.mxu0 0.0
    %1119 = vmatmul.mubr.f32.gmra.mrb[0].mxu0 %v1047
    %v1120 = vpop.f32.mrb[0].mxu0
    %v1121 = vadd.f32 %v1037, %v1120
    %v1122 = vpop.f32.mrb[0].mxu0
    %1123 = vdwg.mxu0
    %vm1124 = vcmask 31744
    %1125 = vst.msk [vmem:[%s6] sm:$0xff] %vm1124, %v1116
    %1126 = vst.msk [vmem:[%s6 + $0x8] sm:$0xff] %vm1124, %v1121
    // Predicated region
    $region30: #{rnn_forward.1} parent=1 // pred_check
      _
    $region31: #{rnn_forward.1} parent=1 // pred_check_branch
      %1128 = sbr.rel (0) target = $region33
    $region32: #{rnn_forward.1} parent=1 // pred_region
      _
    $region33: #{rnn_forward.1} parent=1 // pred_fallthru
      _
    // Predicated region
    $region34: #{rnn_forward.1} parent=1 // pred_check
      _
    $region35: #{rnn_forward.1} parent=1 // pred_check_branch
      %1130 = sbr.rel (0) target = $region37
    $region36: #{rnn_forward.1} parent=1 // pred_region
      _
    $region37: #{rnn_forward.1} parent=1 // pred_fallthru
      _
    %1131 = vsyncpa [#allocation3], 1

</llo_original>
